<compile_context>
chip_gen: v7x
topology: tpu7x:2x2x1
jax: 0.10.0
libtpu: 0.0.40
codegen_flags: <defaults>
</compile_context>

<pallas_src>
import math
import functools

import jax
import jax.numpy as jnp
from jax.experimental import pallas as pl
from jax.experimental.pallas import tpu as pltpu

LN_EPS = 1e-5  # nn.LayerNorm default


def _ffn_kernel(x_ref, gamma_ref, beta_ref, w1_ref, b1_ref, w2_ref, b2_ref,
                o_ref):
    # --- LayerNorm over the hidden (last) dim, f32 statistics ---
    x = x_ref[...].astype(jnp.float32)
    mean = jnp.mean(x, axis=-1, keepdims=True)
    var = jnp.mean(jnp.square(x - mean), axis=-1, keepdims=True)
    xn = (x - mean) * jax.lax.rsqrt(var + LN_EPS)
    xn = xn * gamma_ref[...].astype(jnp.float32) + beta_ref[...].astype(jnp.float32)

    # --- fc1: (rows, H) @ (H, H/4) + b1 ; operands in weight dtype, f32 accum ---
    h = jnp.dot(xn.astype(w1_ref.dtype), w1_ref[...],
                preferred_element_type=jnp.float32)
    h = h + b1_ref[...].astype(jnp.float32)

    # --- exact (erf-based) GELU, matching torch.nn.functional.gelu default ---
    h = 0.5 * h * (1.0 + jax.lax.erf(h * (1.0 / math.sqrt(2.0))))

    # Dropout: module evaluated in inference mode -> identity.
    # TODO(synk): training-mode dropout would use pltpu.prng_seed/prng_random_bits.

    # --- fc2: (rows, H/4) @ (H/4, H) + b2 ---
    y = jnp.dot(h.astype(w2_ref.dtype), w2_ref[...],
                preferred_element_type=jnp.float32)
    y = y + b2_ref[...].astype(jnp.float32)

    o_ref[...] = y.astype(o_ref.dtype)


def _round_up(x, m):
    return ((x + m - 1) // m) * m


def _const_spec(block_shape):
    """BlockSpec for grid-invariant operands; single-buffered to save VMEM."""
    idx = lambda i: (0, 0)
    try:
        return pl.BlockSpec(block_shape, idx, pipeline_mode=pl.Buffered(1))
    except (TypeError, AttributeError):
        # Older Pallas without pipeline_mode: fall back to default buffering.
        return pl.BlockSpec(block_shape, idx)


@functools.partial(jax.jit, static_argnames=("row_tile",))
def feed_forward_block(x, gamma, beta, w1, b1, w2, b2, *, row_tile=256):
    """x: (..., H).  Returns same shape/dtype as x."""
    orig_shape = x.shape
    H = orig_shape[-1]
    H4 = w1.shape[-1]
    rows = math.prod(orig_shape[:-1])  # static Python int (shapes are static)
    x2 = x.reshape(rows, H)

    # Row tiling: large tile for MXU/M-dim utilization, ragged tail via padding.
    tile = min(row_tile, _round_up(rows, 8))
    padded_rows = _round_up(rows, tile)
    if padded_rows != rows:
        x2 = jnp.pad(x2, ((0, padded_rows - rows), (0, 0)))
    grid = (padded_rows // tile,)

    # 2D (1, N) parameter layout keeps the lane axis last on TPU.
    gamma2 = gamma.reshape(1, H)
    beta2 = beta.reshape(1, H)
    b1_2 = b1.reshape(1, H4)
    b2_2 = b2.reshape(1, H)

    # Scoped VMEM estimate: x/out tiles double-buffered, weights single-buffered,
    # plus f32 temp headroom.  Cap at 64 MiB so v7x (64 MiB physical) is safe.
    act_b = jnp.dtype(x.dtype).itemsize
    w_b = jnp.dtype(w1.dtype).itemsize
    est = (2 * 2 * tile * H * act_b
           + (H * H4 + H4 * H) * w_b
           + 2 * tile * (H + H4) * 4)
    vmem_limit = int(min(64 * 1024 * 1024, max(32 * 1024 * 1024, 2 * est)))

    out = pl.pallas_call(
        _ffn_kernel,
        out_shape=jax.ShapeDtypeStruct((padded_rows, H), x.dtype),
        grid_spec=pltpu.PrefetchScalarGridSpec(
            num_scalar_prefetch=0,
            grid=grid,
            in_specs=[
                pl.BlockSpec((tile, H), lambda i: (i, 0)),   # x tile
                _const_spec((1, H)),                         # gamma
                _const_spec((1, H)),                         # beta
                _const_spec((H, H4)),                        # w1 (H, H/4)
                _const_spec((1, H4)),                        # b1
                _const_spec((H4, H)),                        # w2 (H/4, H)
                _const_spec((1, H)),                         # b2
            ],
            out_specs=pl.BlockSpec((tile, H), lambda i: (i, 0)),
        ),
        compiler_params=pltpu.CompilerParams(
            dimension_semantics=("parallel",),
            vmem_limit_bytes=vmem_limit),
    )(x2, gamma2, beta2, w1, b1_2, w2, b2_2)

    if padded_rows != rows:
        out = out[:rows]
    return out.reshape(orig_shape)


def init_params(key, hidden_dim, dtype=jnp.float32):
    """Deterministic synthetic params matching nn.Linear / nn.LayerNorm shapes."""
    H, H4 = hidden_dim, hidden_dim // 4
    k1, k2, k3, k4 = jax.random.split(key, 4)
    # PyTorch Linear stores weight as (out, in); we keep the transposed (in, out)
    # layout so the kernel does x @ w + b.
    bound1 = 1.0 / math.sqrt(H)
    w1 = jax.random.uniform(k1, (H, H4), dtype, -bound1, bound1)
    b1 = jax.random.uniform(k2, (H4,), dtype, -bound1, bound1)
    bound2 = 1.0 / math.sqrt(H4)
    w2 = jax.random.uniform(k3, (H4, H), dtype, -bound2, bound2)
    b2 = jax.random.uniform(k4, (H,), dtype, -bound2, bound2)
    gamma = jnp.ones((H,), dtype)
    beta = jnp.zeros((H,), dtype)
    return gamma, beta, w1, b1, w2, b2


def _reference(x, gamma, beta, w1, b1, w2, b2):
    xf = x.astype(jnp.float32)
    mean = jnp.mean(xf, axis=-1, keepdims=True)
    var = jnp.mean(jnp.square(xf - mean), axis=-1, keepdims=True)
    xn = (xf - mean) / jnp.sqrt(var + LN_EPS) * gamma + beta
    h = xn @ w1 + b1
    h = 0.5 * h * (1.0 + jax.lax.erf(h / math.sqrt(2.0)))
    return (h @ w2 + b2).astype(x.dtype)


if __name__ == "__main__":
    key = jax.random.PRNGKey(0)
    kx, kp = jax.random.split(key)

    batch, seq, hidden = 2, 8, 128   # hidden_dim=128 -> fc1 out = 32
    x = jax.random.normal(kx, (batch, seq, hidden), jnp.float32)
    gamma, beta, w1, b1, w2, b2 = init_params(kp, hidden)

    out = feed_forward_block(x, gamma, beta, w1, b1, w2, b2)
    out = jax.block_until_ready(out)

    ref = _reference(x, gamma, beta, w1, b1, w2, b2)
    assert out.shape == x.shape and out.dtype == x.dtype
    assert jnp.allclose(out, ref, atol=1e-4, rtol=1e-4), "mismatch vs reference"

    print("KERNEL_OK")
</pallas_src>

<mosaic_0001>
module attributes {stable_mosaic.version = 11 : i64} {
  func.func @_ffn_kernel(%arg0: i32, %arg1: memref<16x128xf32, #tpu.memory_space<vmem>>, %arg2: memref<1x128xf32, #tpu.memory_space<vmem>>, %arg3: memref<1x128xf32, #tpu.memory_space<vmem>>, %arg4: memref<128x32xf32, #tpu.memory_space<vmem>>, %arg5: memref<1x32xf32, #tpu.memory_space<vmem>>, %arg6: memref<32x128xf32, #tpu.memory_space<vmem>>, %arg7: memref<1x128xf32, #tpu.memory_space<vmem>>, %arg8: memref<16x128xf32, #tpu.memory_space<vmem>>) attributes {dimension_semantics = [#tpu.dimension_semantics<parallel>], iteration_bounds = array<i64: 1>, scalar_prefetch = 0 : i64, scratch_operands = 0 : i64, tpu.core_type = #tpu.core_type<tc>, window_params = [{transform_indices = @transform_0, window_bounds = array<i64: 16, 128>}, {pipeline_mode = #tpu.pipeline_mode<synchronous>, transform_indices = @transform_1, window_bounds = array<i64: 1, 128>}, {pipeline_mode = #tpu.pipeline_mode<synchronous>, transform_indices = @transform_2, window_bounds = array<i64: 1, 128>}, {pipeline_mode = #tpu.pipeline_mode<synchronous>, transform_indices = @transform_3, window_bounds = array<i64: 128, 32>}, {pipeline_mode = #tpu.pipeline_mode<synchronous>, transform_indices = @transform_4, window_bounds = array<i64: 1, 32>}, {pipeline_mode = #tpu.pipeline_mode<synchronous>, transform_indices = @transform_5, window_bounds = array<i64: 32, 128>}, {pipeline_mode = #tpu.pipeline_mode<synchronous>, transform_indices = @transform_6, window_bounds = array<i64: 1, 128>}, {transform_indices = @transform_7, window_bounds = array<i64: 16, 128>}]} {
    %c0 = arith.constant 0 : index
    %c0_0 = arith.constant 0 : index
    %0 = vector.load %arg1[%c0, %c0_0] : memref<16x128xf32, #tpu.memory_space<vmem>>, vector<16x128xf32>
    %cst = arith.constant dense<0.000000e+00> : vector<16xf32>
    %1 = vector.multi_reduction <add>, %0, %cst [1] : vector<16x128xf32> to vector<16xf32>
    %2 = vector.shape_cast %1 : vector<16xf32> to vector<16x1xf32>
    %cst_1 = arith.constant 1.280000e+02 : f32
    %3 = vector.broadcast %cst_1 : f32 to vector<16x1xf32>
    %4 = arith.divf %2, %3 : vector<16x1xf32>
    %5 = vector.broadcast %4 : vector<16x1xf32> to vector<16x128xf32>
    %6 = arith.subf %0, %5 : vector<16x128xf32>
    %7 = arith.mulf %6, %6 : vector<16x128xf32>
    %cst_2 = arith.constant dense<0.000000e+00> : vector<16xf32>
    %8 = vector.multi_reduction <add>, %7, %cst_2 [1] : vector<16x128xf32> to vector<16xf32>
    %9 = vector.shape_cast %8 : vector<16xf32> to vector<16x1xf32>
    %cst_3 = arith.constant 1.280000e+02 : f32
    %10 = vector.broadcast %cst_3 : f32 to vector<16x1xf32>
    %11 = arith.divf %9, %10 : vector<16x1xf32>
    %12 = vector.broadcast %4 : vector<16x1xf32> to vector<16x128xf32>
    %13 = arith.subf %0, %12 : vector<16x128xf32>
    %cst_4 = arith.constant 9.99999974E-6 : f32
    %14 = vector.broadcast %cst_4 : f32 to vector<16x1xf32>
    %15 = arith.addf %11, %14 : vector<16x1xf32>
    %16 = math.rsqrt %15 : vector<16x1xf32>
    %17 = vector.broadcast %16 : vector<16x1xf32> to vector<16x128xf32>
    %18 = arith.mulf %13, %17 : vector<16x128xf32>
    %c0_5 = arith.constant 0 : index
    %c0_6 = arith.constant 0 : index
    %19 = vector.load %arg2[%c0_5, %c0_6] : memref<1x128xf32, #tpu.memory_space<vmem>>, vector<1x128xf32>
    %20 = vector.broadcast %19 : vector<1x128xf32> to vector<16x128xf32>
    %21 = arith.mulf %18, %20 : vector<16x128xf32>
    %c0_7 = arith.constant 0 : index
    %c0_8 = arith.constant 0 : index
    %22 = vector.load %arg3[%c0_7, %c0_8] : memref<1x128xf32, #tpu.memory_space<vmem>>, vector<1x128xf32>
    %23 = vector.broadcast %22 : vector<1x128xf32> to vector<16x128xf32>
    %24 = arith.addf %21, %23 : vector<16x128xf32>
    %c0_9 = arith.constant 0 : index
    %c0_10 = arith.constant 0 : index
    %25 = vector.load %arg4[%c0_9, %c0_10] : memref<128x32xf32, #tpu.memory_space<vmem>>, vector<128x32xf32>
    %cst_11 = arith.constant dense<0.000000e+00> : vector<16x32xf32>
    %26 = tpu.matmul %24, %25, %cst_11 {dimension_numbers = #tpu.dot_dimension_numbers<[1], [0], [0], [1], [0, 0, 1, 1], [], []>} : vector<16x128xf32>, vector<128x32xf32>, vector<16x32xf32> -> vector<16x32xf32>
    %c0_12 = arith.constant 0 : index
    %c0_13 = arith.constant 0 : index
    %27 = vector.load %arg5[%c0_12, %c0_13] : memref<1x32xf32, #tpu.memory_space<vmem>>, vector<1x32xf32>
    %28 = vector.broadcast %27 : vector<1x32xf32> to vector<16x32xf32>
    %29 = arith.addf %26, %28 : vector<16x32xf32>
    %cst_14 = arith.constant 5.000000e-01 : f32
    %30 = vector.broadcast %cst_14 : f32 to vector<16x32xf32>
    %31 = arith.mulf %30, %29 : vector<16x32xf32>
    %cst_15 = arith.constant 0.707106769 : f32
    %32 = vector.broadcast %cst_15 : f32 to vector<16x32xf32>
    %33 = arith.mulf %29, %32 : vector<16x32xf32>
    %34 = math.erf %33 : vector<16x32xf32>
    %cst_16 = arith.constant 1.000000e+00 : f32
    %35 = vector.broadcast %cst_16 : f32 to vector<16x32xf32>
    %36 = arith.addf %35, %34 : vector<16x32xf32>
    %37 = arith.mulf %31, %36 : vector<16x32xf32>
    %c0_17 = arith.constant 0 : index
    %c0_18 = arith.constant 0 : index
    %38 = vector.load %arg6[%c0_17, %c0_18] : memref<32x128xf32, #tpu.memory_space<vmem>>, vector<32x128xf32>
    %cst_19 = arith.constant dense<0.000000e+00> : vector<16x128xf32>
    %39 = tpu.matmul %37, %38, %cst_19 {dimension_numbers = #tpu.dot_dimension_numbers<[1], [0], [0], [1], [0, 0, 1, 1], [], []>} : vector<16x32xf32>, vector<32x128xf32>, vector<16x128xf32> -> vector<16x128xf32>
    %c0_20 = arith.constant 0 : index
    %c0_21 = arith.constant 0 : index
    %40 = vector.load %arg7[%c0_20, %c0_21] : memref<1x128xf32, #tpu.memory_space<vmem>>, vector<1x128xf32>
    %41 = vector.broadcast %40 : vector<1x128xf32> to vector<16x128xf32>
    %42 = arith.addf %39, %41 : vector<16x128xf32>
    %c0_22 = arith.constant 0 : index
    %c0_23 = arith.constant 0 : index
    %43 = vector.load %arg8[%c0_22, %c0_23] : memref<16x128xf32, #tpu.memory_space<vmem>>, vector<16x128xf32>
    tpu.vector_store %arg8[%c0_22, %c0_23], %42 {strides = array<i32>} : memref<16x128xf32, #tpu.memory_space<vmem>>, vector<16x128xf32>,
    return
  }
  func.func @transform_0(%arg0: i32) -> (i32, i32) {
    %c0_i32 = arith.constant 0 : i32
    %c0_i32_0 = arith.constant 0 : i32
    return %arg0, %c0_i32 : i32, i32
  }
  func.func @transform_1(%arg0: i32) -> (i32, i32) {
    %c0_i32 = arith.constant 0 : i32
    %c0_i32_0 = arith.constant 0 : i32
    %c0_i32_1 = arith.constant 0 : i32
    return %c0_i32, %c0_i32_0 : i32, i32
  }
  func.func @transform_2(%arg0: i32) -> (i32, i32) {
    %c0_i32 = arith.constant 0 : i32
    %c0_i32_0 = arith.constant 0 : i32
    %c0_i32_1 = arith.constant 0 : i32
    return %c0_i32, %c0_i32_0 : i32, i32
  }
  func.func @transform_3(%arg0: i32) -> (i32, i32) {
    %c0_i32 = arith.constant 0 : i32
    %c0_i32_0 = arith.constant 0 : i32
    %c0_i32_1 = arith.constant 0 : i32
    return %c0_i32, %c0_i32_0 : i32, i32
  }
  func.func @transform_4(%arg0: i32) -> (i32, i32) {
    %c0_i32 = arith.constant 0 : i32
    %c0_i32_0 = arith.constant 0 : i32
    %c0_i32_1 = arith.constant 0 : i32
    return %c0_i32, %c0_i32_0 : i32, i32
  }
  func.func @transform_5(%arg0: i32) -> (i32, i32) {
    %c0_i32 = arith.constant 0 : i32
    %c0_i32_0 = arith.constant 0 : i32
    %c0_i32_1 = arith.constant 0 : i32
    return %c0_i32, %c0_i32_0 : i32, i32
  }
  func.func @transform_6(%arg0: i32) -> (i32, i32) {
    %c0_i32 = arith.constant 0 : i32
    %c0_i32_0 = arith.constant 0 : i32
    %c0_i32_1 = arith.constant 0 : i32
    return %c0_i32, %c0_i32_0 : i32, i32
  }
  func.func @transform_7(%arg0: i32) -> (i32, i32) {
    %c0_i32 = arith.constant 0 : i32
    %c0_i32_0 = arith.constant 0 : i32
    return %arg0, %c0_i32 : i32, i32
  }
}

</mosaic_0001>

<llo_original>
// kernel: feed_forward_block.1
$region0: #{feed_forward_block.1}
  #allocation0 [shape = 'u32[]', space=smem, size = 0x4, offset = 0x4, fixed_abs, tag = 'smem constant byte address 0x4 - core index']
  #allocation1 [shape = 'u32[144,128]{1,0:T(1,128)}', space=vmem, size = 0x12000, scoped, tag = 'internal scratch']
  %s0 = inlined_call_operand.vmem [shape: f32[16,128], index: 0, kind: input, shape index: {}]
  %s1 = inlined_call_operand.vmem [shape: f32[1,128], index: 1, kind: input, shape index: {}]
  %s2 = inlined_call_operand.vmem [shape: f32[1,128], index: 2, kind: input, shape index: {}]
  %s3 = inlined_call_operand.vmem [shape: f32[128,32], index: 3, kind: input, shape index: {}]
  %s4 = inlined_call_operand.vmem [shape: f32[1,32], index: 4, kind: input, shape index: {}]
  %s5 = inlined_call_operand.vmem [shape: f32[32,128], index: 5, kind: input, shape index: {}]
  %s6 = inlined_call_operand.vmem [shape: f32[1,128], index: 6, kind: input, shape index: {}]
  %s7 = inlined_call_operand.hbm [shape: f32[16,128], index: 7, kind: output, shape index: {}]
  %s8 = sld [smem:[#allocation0]]
  $region38: #{feed_forward_block.1} parent=0
    _
  %s10 = ssub.s32 1, %s8
  %s11 = scalar_select 0, %s10, %s8
  $region1: #{feed_forward_block.1} parent=0
    #allocation2 [shape = 'u8[8192]{0}', space=vmem, size = 0x2000, scoped, tag = 'output window, operand 0, single buffered']
    #allocation3 [shape = 's32[1]{0}', space=sflag, size = 0x4, scoped, tag = 'scoped memory for feed_forward_block.1']
    %12 = vsyncpa [#allocation3], 0
    // Predicated region
    $region2: #{feed_forward_block.1} parent=1 // pred_check
      _
    $region3: #{feed_forward_block.1} parent=1 // pred_check_branch
      %14 = sbr.rel (0) target = $region5
    $region4: #{feed_forward_block.1} parent=1 // pred_region
      _
    $region5: #{feed_forward_block.1} parent=1 // pred_fallthru
      _
    // Predicated region
    $region6: #{feed_forward_block.1} parent=1 // pred_check
      _
    $region7: #{feed_forward_block.1} parent=1 // pred_check_branch
      %16 = sbr.rel (0) target = $region9
    $region8: #{feed_forward_block.1} parent=1 // pred_region
      _
    $region9: #{feed_forward_block.1} parent=1 // pred_fallthru
      _
    // Predicated region
    $region10: #{feed_forward_block.1} parent=1 // pred_check
      _
    $region11: #{feed_forward_block.1} parent=1 // pred_check_branch
      %18 = sbr.rel (0) target = $region13
    $region12: #{feed_forward_block.1} parent=1 // pred_region
      _
    $region13: #{feed_forward_block.1} parent=1 // pred_fallthru
      _
    // Predicated region
    $region14: #{feed_forward_block.1} parent=1 // pred_check
      _
    $region15: #{feed_forward_block.1} parent=1 // pred_check_branch
      %20 = sbr.rel (0) target = $region17
    $region16: #{feed_forward_block.1} parent=1 // pred_region
      _
    $region17: #{feed_forward_block.1} parent=1 // pred_fallthru
      _
    // Predicated region
    $region18: #{feed_forward_block.1} parent=1 // pred_check
      _
    $region19: #{feed_forward_block.1} parent=1 // pred_check_branch
      %22 = sbr.rel (0) target = $region21
    $region20: #{feed_forward_block.1} parent=1 // pred_region
      _
    $region21: #{feed_forward_block.1} parent=1 // pred_fallthru
      _
    // Predicated region
    $region22: #{feed_forward_block.1} parent=1 // pred_check
      _
    $region23: #{feed_forward_block.1} parent=1 // pred_check_branch
      %24 = sbr.rel (0) target = $region25
    $region24: #{feed_forward_block.1} parent=1 // pred_region
      _
    $region25: #{feed_forward_block.1} parent=1 // pred_fallthru
      _
    // Predicated region
    $region26: #{feed_forward_block.1} parent=1 // pred_check
      _
    $region27: #{feed_forward_block.1} parent=1 // pred_check_branch
      %26 = sbr.rel (0) target = $region29
    $region28: #{feed_forward_block.1} parent=1 // pred_region
      _
    $region29: #{feed_forward_block.1} parent=1 // pred_fallthru
      _
    %v27 = vld [vmem:[%s0] sm:$0xff]
    %v28 = vld [vmem:[%s0 + $0x8] sm:$0xff]
    %29 = vadd.xlane.f32.xlu0 %v27
    %v30 = vpop.xlane.xlu0 %29
    %31 = vadd.xlane.f32.xlu0 %v28
    %v32 = vpop.xlane.xlu0 %31
    %v33 = vrcp.pop 128.0
    %v34 = vmul.f32 %v30, %v33
    %v35 = vmul.f32 %v32, %v33
    %v36 = vsub.f32 %v27, %v34
    %v37 = vsub.f32 %v28, %v35
    %v38 = vmul.f32 %v36, %v36
    %v39 = vmul.f32 %v37, %v37
    %40 = vadd.xlane.f32.xlu0 %v38
    %v41 = vpop.xlane.xlu0 %40
    %42 = vadd.xlane.f32.xlu0 %v39
    %v43 = vpop.xlane.xlu0 %42
    %v44 = vmul.f32 %v41, %v33
    %v45 = vmul.f32 %v43, %v33
    %v46 = vadd.f32 %v44, 1e-05
    %v47 = vadd.f32 %v45, 1e-05
    %v48 = vrsqrt.pop %v46
    %v49 = vrsqrt.pop %v47
    %v50 = vmul.f32 %v36, %v48
    %v51 = vmul.f32 %v37, %v49
    %v52 = vld [vmem:[%s1] sm:$0x1]
    %v54 = vlaneseq
    %v55 = vshrl.u32 %v54, 7
    %v56 = vsub.s32 0, %v55
    %v57 = vrot.slane %v52, %v56
    %v59 = vmul.f32 %v50, %v57
    %v60 = vmul.f32 %v51, %v57
    %v61 = vld [vmem:[%s2] sm:$0x1]
    %v63 = vlaneseq
    %v64 = vshrl.u32 %v63, 7
    %v65 = vsub.s32 0, %v64
    %v66 = vrot.slane %v61, %v65
    %v68 = vadd.f32 %v59, %v66
    %v69 = vadd.f32 %v60, %v66
    %v70 = vld [vmem:[%s3] sm:$0xff]
    %v71 = vld [vmem:[%s3 + $0x8] sm:$0xff]
    %v72 = vld [vmem:[%s3 + $0x10] sm:$0xff]
    %v73 = vld [vmem:[%s3 + $0x18] sm:$0xff]
    %v74 = vld [vmem:[%s3 + $0x20] sm:$0xff]
    %v75 = vld [vmem:[%s3 + $0x28] sm:$0xff]
    %v76 = vld [vmem:[%s3 + $0x30] sm:$0xff]
    %v77 = vld [vmem:[%s3 + $0x38] sm:$0xff]
    %v78 = vld [vmem:[%s3 + $0x40] sm:$0xff]
    %v79 = vld [vmem:[%s3 + $0x48] sm:$0xff]
    %v80 = vld [vmem:[%s3 + $0x50] sm:$0xff]
    %v81 = vld [vmem:[%s3 + $0x58] sm:$0xff]
    %v82 = vld [vmem:[%s3 + $0x60] sm:$0xff]
    %v83 = vld [vmem:[%s3 + $0x68] sm:$0xff]
    %v84 = vld [vmem:[%s3 + $0x70] sm:$0xff]
    %v85 = vld [vmem:[%s3 + $0x78] sm:$0xff]
    %v86 = vld [vmem:[%s4] sm:$0x1]
    %v88 = vlaneseq
    %v89 = vshrl.u32 %v88, 7
    %v90 = vsub.s32 0, %v89
    %v91 = vrot.slane %v86, %v90
    %93 = vmatprep.subr.mxu0 0.0
    %94 = vmatpush1.msra.mxu0 %v70
    %95 = vmatprep.subr.mxu0 0.0
    %96 = vmatpush1.msra.mxu0 %v71
    %97 = vmatprep.subr.mxu0 0.0
    %98 = vmatpush1.msra.mxu0 %v72
    %99 = vmatprep.subr.mxu0 0.0
    %100 = vmatpush1.msra.mxu0 %v73
    %101 = vmatprep.subr.mxu0 0.0
    %102 = vmatpush1.msra.mxu0 %v74
    %103 = vmatprep.subr.mxu0 0.0
    %104 = vmatpush1.msra.mxu0 %v75
    %105 = vmatprep.subr.mxu0 0.0
    %106 = vmatpush1.msra.mxu0 %v76
    %107 = vmatprep.subr.mxu0 0.0
    %108 = vmatpush1.msra.mxu0 %v77
    %109 = vmatprep.subr.mxu0 0.0
    %110 = vmatpush1.msra.mxu0 %v78
    %111 = vmatprep.subr.mxu0 0.0
    %112 = vmatpush1.msra.mxu0 %v79
    %113 = vmatprep.subr.mxu0 0.0
    %114 = vmatpush1.msra.mxu0 %v80
    %115 = vmatprep.subr.mxu0 0.0
    %116 = vmatpush1.msra.mxu0 %v81
    %117 = vmatprep.subr.mxu0 0.0
    %118 = vmatpush1.msra.mxu0 %v82
    %119 = vmatprep.subr.mxu0 0.0
    %120 = vmatpush1.msra.mxu0 %v83
    %121 = vmatprep.subr.mxu0 0.0
    %122 = vmatpush1.msra.mxu0 %v84
    %123 = vmatprep.subr.mxu0 0.0
    %124 = vmatpush1.msra.mxu0 %v85
    %125 = vmatprep.subr.mxu0 0.0
    %126 = vmatpush1.msra.mxu0 0.0
    %127 = vmatprep.subr.mxu0 0.0
    %128 = vmatpush1.msra.mxu0 0.0
    %129 = vmatprep.subr.mxu0 0.0
    %130 = vmatpush1.msra.mxu0 0.0
    %131 = vmatprep.subr.mxu0 0.0
    %132 = vmatpush1.msra.mxu0 0.0
    %133 = vmatprep.subr.mxu0 0.0
    %134 = vmatpush1.msra.mxu0 0.0
    %135 = vmatprep.subr.mxu0 0.0
    %136 = vmatpush1.msra.mxu0 0.0
    %137 = vmatprep.subr.mxu0 0.0
    %138 = vmatpush1.msra.mxu0 0.0
    %139 = vmatprep.subr.mxu0 0.0
    %140 = vmatpush1.msra.mxu0 0.0
    %141 = vmatprep.subr.mxu0 0.0
    %142 = vmatpush1.msra.mxu0 0.0
    %143 = vmatprep.subr.mxu0 0.0
    %144 = vmatpush1.msra.mxu0 0.0
    %145 = vmatprep.subr.mxu0 0.0
    %146 = vmatpush1.msra.mxu0 0.0
    %147 = vmatprep.subr.mxu0 0.0
    %148 = vmatpush1.msra.mxu0 0.0
    %149 = vmatprep.subr.mxu0 0.0
    %150 = vmatpush1.msra.mxu0 0.0
    %151 = vmatprep.subr.mxu0 0.0
    %152 = vmatpush1.msra.mxu0 0.0
    %153 = vmatprep.subr.mxu0 0.0
    %154 = vmatpush1.msra.mxu0 0.0
    %155 = vmatprep.subr.mxu0 0.0
    %156 = vmatpush1.msra.mxu0 0.0
    %157 = vmatprep.mubr.f32.mxu0 0.0
    %158 = vmatmul.mubr.f32.gmra.mrb[0].mxu0 %v68
    %v159 = vpop.f32.mrb[0].mxu0
    %v160 = vadd.f32 %v91, %v159
    %v161 = vpop.f32.mrb[0].mxu0
    %162 = vmatprep.mubr.f32.mxu0 0.0
    %163 = vmatmul.mubr.f32.gmra.mrb[0].mxu0 %v69
    %v164 = vpop.f32.mrb[0].mxu0
    %v165 = vadd.f32 %v91, %v164
    %v166 = vpop.f32.mrb[0].mxu0
    %167 = vdwg.mxu0
    %v168 = vmul.f32 %v160, 0.5
    %v169 = vmul.f32 %v165, 0.5
    %v170 = vmul.f32 %v160, 0.70710677
    %v171 = vmul.f32 %v165, 0.70710677
    %v172 = verf.f32.pop %v170
    %v173 = verf.f32.pop %v171
    %v174 = vadd.f32 %v172, 1.0
    %v175 = vadd.f32 %v173, 1.0
    %v176 = vmul.f32 %v168, %v174
    %v177 = vmul.f32 %v169, %v175
    %v178 = vld [vmem:[%s5] sm:$0xff]
    %v179 = vld [vmem:[%s5 + $0x8] sm:$0xff]
    %v180 = vld [vmem:[%s5 + $0x10] sm:$0xff]
    %v181 = vld [vmem:[%s5 + $0x18] sm:$0xff]
    %v182 = vld [vmem:[%s6] sm:$0x1]
    %v184 = vlaneseq
    %v185 = vshrl.u32 %v184, 7
    %v186 = vsub.s32 0, %v185
    %v187 = vrot.slane %v182, %v186
    %vm189 = vcmask 261120
    %v191 = vsel %vm189, %v176, 0
    %v194 = vsel %vm189, %v177, 0
    %196 = vmatprep.subr.mxu0 0.0
    %197 = vmatpush1.msra.mxu0 %v178
    %198 = vmatprep.subr.mxu0 0.0
    %199 = vmatpush1.msra.mxu0 %v179
    %200 = vmatprep.subr.mxu0 0.0
    %201 = vmatpush1.msra.mxu0 %v180
    %202 = vmatprep.subr.mxu0 0.0
    %203 = vmatpush1.msra.mxu0 %v181
    %204 = vmatprep.subr.mxu0 0.0
    %205 = vmatpush1.msra.mxu0 0.0
    %206 = vmatprep.subr.mxu0 0.0
    %207 = vmatpush1.msra.mxu0 0.0
    %208 = vmatprep.subr.mxu0 0.0
    %209 = vmatpush1.msra.mxu0 0.0
    %210 = vmatprep.subr.mxu0 0.0
    %211 = vmatpush1.msra.mxu0 0.0
    %212 = vmatprep.subr.mxu0 0.0
    %213 = vmatpush1.msra.mxu0 0.0
    %214 = vmatprep.subr.mxu0 0.0
    %215 = vmatpush1.msra.mxu0 0.0
    %216 = vmatprep.subr.mxu0 0.0
    %217 = vmatpush1.msra.mxu0 0.0
    %218 = vmatprep.subr.mxu0 0.0
    %219 = vmatpush1.msra.mxu0 0.0
    %220 = vmatprep.subr.mxu0 0.0
    %221 = vmatpush1.msra.mxu0 0.0
    %222 = vmatprep.subr.mxu0 0.0
    %223 = vmatpush1.msra.mxu0 0.0
    %224 = vmatprep.subr.mxu0 0.0
    %225 = vmatpush1.msra.mxu0 0.0
    %226 = vmatprep.subr.mxu0 0.0
    %227 = vmatpush1.msra.mxu0 0.0
    %228 = vmatprep.subr.mxu0 0.0
    %229 = vmatpush1.msra.mxu0 0.0
    %230 = vmatprep.subr.mxu0 0.0
    %231 = vmatpush1.msra.mxu0 0.0
    %232 = vmatprep.subr.mxu0 0.0
    %233 = vmatpush1.msra.mxu0 0.0
    %234 = vmatprep.subr.mxu0 0.0
    %235 = vmatpush1.msra.mxu0 0.0
    %236 = vmatprep.subr.mxu0 0.0
    %237 = vmatpush1.msra.mxu0 0.0
    %238 = vmatprep.subr.mxu0 0.0
    %239 = vmatpush1.msra.mxu0 0.0
    %240 = vmatprep.subr.mxu0 0.0
    %241 = vmatpush1.msra.mxu0 0.0
    %242 = vmatprep.subr.mxu0 0.0
    %243 = vmatpush1.msra.mxu0 0.0
    %244 = vmatprep.subr.mxu0 0.0
    %245 = vmatpush1.msra.mxu0 0.0
    %246 = vmatprep.subr.mxu0 0.0
    %247 = vmatpush1.msra.mxu0 0.0
    %248 = vmatprep.subr.mxu0 0.0
    %249 = vmatpush1.msra.mxu0 0.0
    %250 = vmatprep.subr.mxu0 0.0
    %251 = vmatpush1.msra.mxu0 0.0
    %252 = vmatprep.subr.mxu0 0.0
    %253 = vmatpush1.msra.mxu0 0.0
    %254 = vmatprep.subr.mxu0 0.0
    %255 = vmatpush1.msra.mxu0 0.0
    %256 = vmatprep.subr.mxu0 0.0
    %257 = vmatpush1.msra.mxu0 0.0
    %258 = vmatprep.subr.mxu0 0.0
    %259 = vmatpush1.msra.mxu0 0.0
    %260 = vmatprep.mubr.f32.mxu0 0.0
    %261 = vmatmul.mubr.f32.gmra.mrb[0].mxu0 %v191
    %v262 = vpop.f32.mrb[0].mxu0
    %v263 = vadd.f32 %v187, %v262
    %v264 = vpop.f32.mrb[0].mxu0
    %265 = vmatprep.mubr.f32.mxu0 0.0
    %266 = vmatmul.mubr.f32.gmra.mrb[0].mxu0 %v194
    %v267 = vpop.f32.mrb[0].mxu0
    %v268 = vadd.f32 %v187, %v267
    %v269 = vpop.f32.mrb[0].mxu0
    %270 = vdwg.mxu0
    %271 = vst [vmem:[#allocation2] sm:$0xff] %v263
    %272 = vst [vmem:[#allocation2 + $0x8] sm:$0xff] %v268
    // Predicated region
    $region30: #{feed_forward_block.1} parent=1 // pred_check
      _
    $region31: #{feed_forward_block.1} parent=1 // pred_check_branch
      %274 = sbr.rel (0) target = $region33
    $region32: #{feed_forward_block.1} parent=1 // pred_region
      %s276 = ssub.s32 256, 256
      %277 = vsyncadd [#allocation3], %s276
      %s278 = sshll.u32 [#allocation2], 4
      %s279 = int_to_ptr.vmem [resolvable:$true] %s278
      %284 = dma.vmem_to_hbm [thread:$0]  %s279, 256, %s7, [#allocation3], 128, 128, 8
    $region33: #{feed_forward_block.1} parent=1 // pred_fallthru
      _
    // Predicated region
    $region34: #{feed_forward_block.1} parent=1 // pred_check
      _
    $region35: #{feed_forward_block.1} parent=1 // pred_check_branch
      %286 = sbr.rel (0) target = $region37
    $region36: #{feed_forward_block.1} parent=1 // pred_region
      %287 = dma.done [#allocation3], 256
    $region37: #{feed_forward_block.1} parent=1 // pred_fallthru
      _
    %288 = vsyncpa [#allocation3], 1

</llo_original>
